<compile_context>
chip_gen: v7x
topology: tpu7x:2x2x1
jax: 0.10.0
libtpu: 0.0.40
codegen_flags: <defaults>
</compile_context>

<pallas_src>
import numpy as np
import jax
import jax.numpy as jnp
from jax.experimental import pallas as pl
from jax.experimental.pallas import tpu as pltpu


# ------------------------- fused Pallas kernel -------------------------

def _gnlb_fused_kernel(x1_ref, wm_ref, bm_ref, wo_ref, bo_ref, wl_ref, bl_ref,
                       o_ref):
    """Channel-major GNLB head on one lane tile of M = B*H*W columns.

    x1_ref : (3, TM)          residual input (x1_src, channel-major)
    wm/bm  : (C, C), (C, 1)   conv_mid  (PyTorch (out, in) 1x1 layout)
    wo/bo  : (3, C), (3, 1)   conv_out
    wl/bl  : (3, 3), (3, 1)   conv_last
    o_ref  : (3, TM)          output (channel-major, lane-dense)
    """
    tm = x1_ref.shape[-1]
    c = wm_ref.shape[0]

    # x01_cat is identically 1: Softmax2d over a size-1 channel axis.
    # (g0, g1, g01 are likewise all-ones; their (HW,HW) matmuls are dropped.)
    cat = jnp.ones((c, tm), jnp.float32)

    h = jnp.dot(wm_ref[...], cat, preferred_element_type=jnp.float32) + bm_ref[...]   # conv_mid
    h = jnp.dot(wo_ref[...], h, preferred_element_type=jnp.float32) + bo_ref[...]     # conv_out
    h = h + x1_ref[...]                                                                # + x1_src
    h = jnp.dot(wl_ref[...], h, preferred_element_type=jnp.float32) + bl_ref[...]     # conv_last
    o_ref[...] = h


# ------------------------- JAX wrapper -------------------------

def gnlb_forward(x0, x1_src, pp, *, tile_m=512):
    """GNLB forward pass.

    x0 only feeds the all-ones softmax chain, so it does not influence the
    (finite-input) output; it is accepted for API parity with the module.
    """
    del x0  # dead under the Softmax2d(size-1 axis) identity (see header).
    B, Cin, H, W = x1_src.shape
    M = B * H * W                              # batch collapsed into lanes
    TM = M if M <= tile_m else tile_m
    assert M % TM == 0, "B*H*W must be divisible by the lane tile"
    C = pp["wm"].shape[0]

    # NCHW -> channel-major (3, B*HW): lane-dense residual input.
    x1t = jnp.transpose(x1_src, (1, 0, 2, 3)).reshape(Cin, M)

    out_t = pl.pallas_call(
        _gnlb_fused_kernel,
        out_shape=jax.ShapeDtypeStruct((Cin, M), jnp.float32),
        grid=(pl.cdiv(M, TM),),
        in_specs=[
            pl.BlockSpec((Cin, TM), lambda i: (0, i)),   # x1 residual tile
            pl.BlockSpec((C, C), lambda i: (0, 0)),      # conv_mid weight
            pl.BlockSpec((C, 1), lambda i: (0, 0)),      # conv_mid bias
            pl.BlockSpec((Cin, C), lambda i: (0, 0)),    # conv_out weight
            pl.BlockSpec((Cin, 1), lambda i: (0, 0)),    # conv_out bias
            pl.BlockSpec((Cin, Cin), lambda i: (0, 0)),  # conv_last weight
            pl.BlockSpec((Cin, 1), lambda i: (0, 0)),    # conv_last bias
        ],
        out_specs=pl.BlockSpec((Cin, TM), lambda i: (0, i)),
        compiler_params=pltpu.CompilerParams(
            dimension_semantics=("parallel",)),          # v7x: 2 TCs if >1 tile
    )(x1t, pp["wm"], pp["bm"], pp["wo"], pp["bo"], pp["wl"], pp["bl"])

    # channel-major -> NCHW (wrapper-side layout plumbing).
    return out_t.reshape(Cin, B, H, W).transpose(1, 0, 2, 3)


# ------------- numpy reference: FULL faithful PyTorch semantics -------------

def ref_forward_np(x0, x1_src, raw):
    x0 = np.asarray(x0, np.float32)
    x1s = np.asarray(x1_src, np.float32)
    B, _, H, W = x0.shape
    HW = H * W

    def conv3x3(x, w, b):
        xp = np.pad(x, ((0, 0), (0, 0), (1, 1), (1, 1)))
        out = np.broadcast_to(b[None, :, None, None],
                              (B, w.shape[0], H, W)).astype(np.float32).copy()
        for dh in range(3):
            for dw in range(3):
                out += np.einsum('bchw,oc->bohw',
                                 xp[:, :, dh:dh + H, dw:dw + W], w[:, :, dh, dw])
        return out

    def conv1x1(x, w, b):
        return np.einsum('bchw,oc->bohw', x, w[:, :, 0, 0]) + b[None, :, None, None]

    def smax_c1(v):                      # Softmax2d over a size-1 channel axis
        e = np.exp(v - v)
        return e / e

    x0f = conv3x3(x0, raw["w0"], raw["b0"]).reshape(B, -1, HW)    # (B, C, HW)
    x1f = conv3x3(x1s, raw["w1"], raw["b1"]).reshape(B, -1, HW)

    def same_block(xf):
        return smax_c1(xf.transpose(0, 2, 1) @ xf)                # (B, HW, HW)

    g0 = same_block(x0f)
    g1 = same_block(x1f)
    g01 = smax_c1(g0 @ g1)
    x1_down = x1f.transpose(0, 2, 1)                              # (B, HW, C)
    cat = smax_c1(g01 @ x1_down)                                  # (B, HW, C)
    cat = cat.transpose(0, 2, 1).reshape(B, -1, H, W)             # 'b (s1 s2) c -> b c s1 s2'
    y = conv1x1(cat, raw["wm"], raw["bm"])
    y = conv1x1(y, raw["wo"], raw["bo"])
    y = y + x1s
    y = conv1x1(y, raw["wl"], raw["bl"])
    return y


# ------------------------- main -------------------------

if __name__ == "__main__":
    B, H, W, mid_c = 2, 8, 8, 32

    key = jax.random.PRNGKey(0)
    ks = jax.random.split(key, 12)

    def init(k, shape, scale=0.1):
        return scale * jax.random.normal(k, shape, jnp.float32)

    # Raw parameters in PyTorch Conv2d layout (Cout, Cin, kh, kw).
    raw = dict(
        w0=init(ks[0], (mid_c, 1, 3, 3)), b0=init(ks[1], (mid_c,)),
        w1=init(ks[2], (mid_c, 3, 3, 3)), b1=init(ks[3], (mid_c,)),
        wm=init(ks[4], (mid_c, mid_c, 1, 1)), bm=init(ks[5], (mid_c,)),
        wo=init(ks[6], (3, mid_c, 1, 1)), bo=init(ks[7], (3,)),
        wl=init(ks[8], (3, 3, 1, 1)), bl=init(ks[9], (3,)),
    )

    # Kernel-layout params: 1x1 weights kept in PyTorch (out, in) layout
    # (channel-major math), biases as column vectors.
    pp = dict(
        wm=raw["wm"][:, :, 0, 0], bm=raw["bm"].reshape(mid_c, 1),
        wo=raw["wo"][:, :, 0, 0], bo=raw["bo"].reshape(3, 1),
        wl=raw["wl"][:, :, 0, 0], bl=raw["bl"].reshape(3, 1),
    )

    x0 = jax.random.normal(ks[10], (B, 1, H, W), jnp.float32)
    x1_src = jax.random.normal(ks[11], (B, 3, H, W), jnp.float32)

    out = jax.block_until_ready(gnlb_forward(x0, x1_src, pp))

    ref = ref_forward_np(x0, x1_src, {k: np.asarray(v) for k, v in raw.items()})
    assert out.shape == (B, 3, H, W), out.shape
    err = np.abs(np.asarray(out) - ref).max()
    assert np.allclose(np.asarray(out), ref, atol=1e-3, rtol=1e-3), f"max abs err {err}"

    print("KERNEL_OK")
</pallas_src>

<mosaic_0001>
module attributes {stable_mosaic.version = 11 : i64} {
  func.func @_gnlb_fused_kernel(%arg0: i32, %arg1: memref<3x128xf32, #tpu.memory_space<vmem>>, %arg2: memref<32x32xf32, #tpu.memory_space<vmem>>, %arg3: memref<32x1xf32, #tpu.memory_space<vmem>>, %arg4: memref<3x32xf32, #tpu.memory_space<vmem>>, %arg5: memref<3x1xf32, #tpu.memory_space<vmem>>, %arg6: memref<3x3xf32, #tpu.memory_space<vmem>>, %arg7: memref<3x1xf32, #tpu.memory_space<vmem>>, %arg8: memref<3x128xf32, #tpu.memory_space<vmem>>) attributes {dimension_semantics = [#tpu.dimension_semantics<parallel>], iteration_bounds = array<i64: 1>, scalar_prefetch = 0 : i64, scratch_operands = 0 : i64, tpu.core_type = #tpu.core_type<tc>, window_params = [{transform_indices = @transform_0, window_bounds = array<i64: 3, 128>}, {pipeline_mode = #tpu.pipeline_mode<synchronous>, transform_indices = @transform_1, window_bounds = array<i64: 32, 32>}, {pipeline_mode = #tpu.pipeline_mode<synchronous>, transform_indices = @transform_2, window_bounds = array<i64: 32, 1>}, {pipeline_mode = #tpu.pipeline_mode<synchronous>, transform_indices = @transform_3, window_bounds = array<i64: 3, 32>}, {pipeline_mode = #tpu.pipeline_mode<synchronous>, transform_indices = @transform_4, window_bounds = array<i64: 3, 1>}, {pipeline_mode = #tpu.pipeline_mode<synchronous>, transform_indices = @transform_5, window_bounds = array<i64: 3, 3>}, {pipeline_mode = #tpu.pipeline_mode<synchronous>, transform_indices = @transform_6, window_bounds = array<i64: 3, 1>}, {transform_indices = @transform_7, window_bounds = array<i64: 3, 128>}]} {
    %cst = arith.constant 1.000000e+00 : f32
    %0 = vector.broadcast %cst : f32 to vector<32x128xf32>
    %c0 = arith.constant 0 : index
    %c0_0 = arith.constant 0 : index
    %1 = vector.load %arg2[%c0, %c0_0] : memref<32x32xf32, #tpu.memory_space<vmem>>, vector<32x32xf32>
    %cst_1 = arith.constant dense<0.000000e+00> : vector<32x128xf32>
    %2 = tpu.matmul %1, %0, %cst_1 {dimension_numbers = #tpu.dot_dimension_numbers<[1], [0], [0], [1], [0, 0, 1, 1], [], []>} : vector<32x32xf32>, vector<32x128xf32>, vector<32x128xf32> -> vector<32x128xf32>
    %c0_2 = arith.constant 0 : index
    %c0_3 = arith.constant 0 : index
    %3 = vector.load %arg3[%c0_2, %c0_3] : memref<32x1xf32, #tpu.memory_space<vmem>>, vector<32x1xf32>
    %4 = vector.broadcast %3 : vector<32x1xf32> to vector<32x128xf32>
    %5 = arith.addf %2, %4 : vector<32x128xf32>
    %c0_4 = arith.constant 0 : index
    %c0_5 = arith.constant 0 : index
    %6 = vector.load %arg4[%c0_4, %c0_5] : memref<3x32xf32, #tpu.memory_space<vmem>>, vector<3x32xf32>
    %cst_6 = arith.constant dense<0.000000e+00> : vector<3x128xf32>
    %7 = tpu.matmul %6, %5, %cst_6 {dimension_numbers = #tpu.dot_dimension_numbers<[1], [0], [0], [1], [0, 0, 1, 1], [], []>} : vector<3x32xf32>, vector<32x128xf32>, vector<3x128xf32> -> vector<3x128xf32>
    %c0_7 = arith.constant 0 : index
    %c0_8 = arith.constant 0 : index
    %8 = vector.load %arg5[%c0_7, %c0_8] : memref<3x1xf32, #tpu.memory_space<vmem>>, vector<3x1xf32>
    %9 = vector.broadcast %8 : vector<3x1xf32> to vector<3x128xf32>
    %10 = arith.addf %7, %9 : vector<3x128xf32>
    %c0_9 = arith.constant 0 : index
    %c0_10 = arith.constant 0 : index
    %11 = vector.load %arg1[%c0_9, %c0_10] : memref<3x128xf32, #tpu.memory_space<vmem>>, vector<3x128xf32>
    %12 = arith.addf %10, %11 : vector<3x128xf32>
    %c0_11 = arith.constant 0 : index
    %c0_12 = arith.constant 0 : index
    %13 = vector.load %arg6[%c0_11, %c0_12] : memref<3x3xf32, #tpu.memory_space<vmem>>, vector<3x3xf32>
    %cst_13 = arith.constant dense<0.000000e+00> : vector<3x128xf32>
    %14 = tpu.matmul %13, %12, %cst_13 {dimension_numbers = #tpu.dot_dimension_numbers<[1], [0], [0], [1], [0, 0, 1, 1], [], []>} : vector<3x3xf32>, vector<3x128xf32>, vector<3x128xf32> -> vector<3x128xf32>
    %c0_14 = arith.constant 0 : index
    %c0_15 = arith.constant 0 : index
    %15 = vector.load %arg7[%c0_14, %c0_15] : memref<3x1xf32, #tpu.memory_space<vmem>>, vector<3x1xf32>
    %16 = vector.broadcast %15 : vector<3x1xf32> to vector<3x128xf32>
    %17 = arith.addf %14, %16 : vector<3x128xf32>
    %c0_16 = arith.constant 0 : index
    %c0_17 = arith.constant 0 : index
    %18 = vector.load %arg8[%c0_16, %c0_17] : memref<3x128xf32, #tpu.memory_space<vmem>>, vector<3x128xf32>
    tpu.vector_store %arg8[%c0_16, %c0_17], %17 {strides = array<i32>} : memref<3x128xf32, #tpu.memory_space<vmem>>, vector<3x128xf32>,
    return
  }
  func.func @transform_0(%arg0: i32) -> (i32, i32) {
    %c0_i32 = arith.constant 0 : i32
    %c0_i32_0 = arith.constant 0 : i32
    return %c0_i32, %arg0 : i32, i32
  }
  func.func @transform_1(%arg0: i32) -> (i32, i32) {
    %c0_i32 = arith.constant 0 : i32
    %c0_i32_0 = arith.constant 0 : i32
    %c0_i32_1 = arith.constant 0 : i32
    return %c0_i32, %c0_i32_0 : i32, i32
  }
  func.func @transform_2(%arg0: i32) -> (i32, i32) {
    %c0_i32 = arith.constant 0 : i32
    %c0_i32_0 = arith.constant 0 : i32
    %c0_i32_1 = arith.constant 0 : i32
    return %c0_i32, %c0_i32_0 : i32, i32
  }
  func.func @transform_3(%arg0: i32) -> (i32, i32) {
    %c0_i32 = arith.constant 0 : i32
    %c0_i32_0 = arith.constant 0 : i32
    %c0_i32_1 = arith.constant 0 : i32
    return %c0_i32, %c0_i32_0 : i32, i32
  }
  func.func @transform_4(%arg0: i32) -> (i32, i32) {
    %c0_i32 = arith.constant 0 : i32
    %c0_i32_0 = arith.constant 0 : i32
    %c0_i32_1 = arith.constant 0 : i32
    return %c0_i32, %c0_i32_0 : i32, i32
  }
  func.func @transform_5(%arg0: i32) -> (i32, i32) {
    %c0_i32 = arith.constant 0 : i32
    %c0_i32_0 = arith.constant 0 : i32
    %c0_i32_1 = arith.constant 0 : i32
    return %c0_i32, %c0_i32_0 : i32, i32
  }
  func.func @transform_6(%arg0: i32) -> (i32, i32) {
    %c0_i32 = arith.constant 0 : i32
    %c0_i32_0 = arith.constant 0 : i32
    %c0_i32_1 = arith.constant 0 : i32
    return %c0_i32, %c0_i32_0 : i32, i32
  }
  func.func @transform_7(%arg0: i32) -> (i32, i32) {
    %c0_i32 = arith.constant 0 : i32
    %c0_i32_0 = arith.constant 0 : i32
    return %c0_i32, %arg0 : i32, i32
  }
}

</mosaic_0001>

<llo_original>
// kernel: tpu_custom_call.1
$region0: #{tpu_custom_call.1}
  #allocation0 [shape = 'u32[]', space=smem, size = 0x4, offset = 0x4, fixed_abs, tag = 'smem constant byte address 0x4 - core index']
  #allocation1 [shape = 'u32[144,128]{1,0:T(1,128)}', space=vmem, size = 0x12000, scoped, tag = 'internal scratch']
  %s0 = inlined_call_operand.vmem [shape: f32[3,128], index: 0, kind: input, shape index: {}]
  %s1 = inlined_call_operand.vmem [shape: f32[32,32], index: 1, kind: input, shape index: {}]
  %s2 = inlined_call_operand.vmem [shape: f32[32,1], index: 2, kind: input, shape index: {}]
  %s3 = inlined_call_operand.vmem [shape: f32[3,32], index: 3, kind: input, shape index: {}]
  %s4 = inlined_call_operand.vmem [shape: f32[3,1], index: 4, kind: input, shape index: {}]
  %s5 = inlined_call_operand.vmem [shape: f32[3,3], index: 5, kind: input, shape index: {}]
  %s6 = inlined_call_operand.vmem [shape: f32[3,1], index: 6, kind: input, shape index: {}]
  %s7 = inlined_call_operand.hbm [shape: f32[3,128], index: 7, kind: output, shape index: {}]
  %s8 = sld [smem:[#allocation0]]
  $region38: #{tpu_custom_call.1} parent=0
    _
  %s10 = ssub.s32 1, %s8
  %s11 = scalar_select 0, %s10, %s8
  $region1: #{tpu_custom_call.1} parent=0
    #allocation2 [shape = 'u8[2048]{0}', space=vmem, size = 0x800, scoped, tag = 'output window, operand 0, single buffered']
    #allocation3 [shape = 's32[1]{0}', space=sflag, size = 0x4, scoped, tag = 'scoped memory for tpu_custom_call.1']
    %12 = vsyncpa [#allocation3], 0
    // Predicated region
    $region2: #{tpu_custom_call.1} parent=1 // pred_check
      _
    $region3: #{tpu_custom_call.1} parent=1 // pred_check_branch
      %14 = sbr.rel (0) target = $region5
    $region4: #{tpu_custom_call.1} parent=1 // pred_region
      _
    $region5: #{tpu_custom_call.1} parent=1 // pred_fallthru
      _
    // Predicated region
    $region6: #{tpu_custom_call.1} parent=1 // pred_check
      _
    $region7: #{tpu_custom_call.1} parent=1 // pred_check_branch
      %16 = sbr.rel (0) target = $region9
    $region8: #{tpu_custom_call.1} parent=1 // pred_region
      _
    $region9: #{tpu_custom_call.1} parent=1 // pred_fallthru
      _
    // Predicated region
    $region10: #{tpu_custom_call.1} parent=1 // pred_check
      _
    $region11: #{tpu_custom_call.1} parent=1 // pred_check_branch
      %18 = sbr.rel (0) target = $region13
    $region12: #{tpu_custom_call.1} parent=1 // pred_region
      _
    $region13: #{tpu_custom_call.1} parent=1 // pred_fallthru
      _
    // Predicated region
    $region14: #{tpu_custom_call.1} parent=1 // pred_check
      _
    $region15: #{tpu_custom_call.1} parent=1 // pred_check_branch
      %20 = sbr.rel (0) target = $region17
    $region16: #{tpu_custom_call.1} parent=1 // pred_region
      _
    $region17: #{tpu_custom_call.1} parent=1 // pred_fallthru
      _
    // Predicated region
    $region18: #{tpu_custom_call.1} parent=1 // pred_check
      _
    $region19: #{tpu_custom_call.1} parent=1 // pred_check_branch
      %22 = sbr.rel (0) target = $region21
    $region20: #{tpu_custom_call.1} parent=1 // pred_region
      _
    $region21: #{tpu_custom_call.1} parent=1 // pred_fallthru
      _
    // Predicated region
    $region22: #{tpu_custom_call.1} parent=1 // pred_check
      _
    $region23: #{tpu_custom_call.1} parent=1 // pred_check_branch
      %24 = sbr.rel (0) target = $region25
    $region24: #{tpu_custom_call.1} parent=1 // pred_region
      _
    $region25: #{tpu_custom_call.1} parent=1 // pred_fallthru
      _
    // Predicated region
    $region26: #{tpu_custom_call.1} parent=1 // pred_check
      _
    $region27: #{tpu_custom_call.1} parent=1 // pred_check_branch
      %26 = sbr.rel (0) target = $region29
    $region28: #{tpu_custom_call.1} parent=1 // pred_region
      _
    $region29: #{tpu_custom_call.1} parent=1 // pred_fallthru
      _
    %v27 = vld [vmem:[%s1] sm:$0xff]
    %v28 = vld [vmem:[%s1 + $0x8] sm:$0xff]
    %v29 = vld [vmem:[%s1 + $0x10] sm:$0xff]
    %v30 = vld [vmem:[%s1 + $0x18] sm:$0xff]
    %v31 = vld [vmem:[%s2] sm:$0xff]
    %v32 = vld [vmem:[%s2 + $0x8] sm:$0xff]
    %v33 = vld [vmem:[%s2 + $0x10] sm:$0xff]
    %v34 = vld [vmem:[%s2 + $0x18] sm:$0xff]
    %36 = vset.pattern.permute.xlu0 0
    %37 = vperm.xlu0 %36, %v31
    %v38 = vpop.permute.xlu0 %37
    %41 = vset.pattern.permute.xlu0 0
    %42 = vperm.xlu0 %41, %v32
    %v43 = vpop.permute.xlu0 %42
    %46 = vset.pattern.permute.xlu0 0
    %47 = vperm.xlu0 %46, %v33
    %v48 = vpop.permute.xlu0 %47
    %51 = vset.pattern.permute.xlu0 0
    %52 = vperm.xlu0 %51, %v34
    %v53 = vpop.permute.xlu0 %52
    %vm55 = vcmask 261120
    %v57 = vsel %vm55, %v27, 0
    %v60 = vsel %vm55, %v28, 0
    %v63 = vsel %vm55, %v29, 0
    %v66 = vsel %vm55, %v30, 0
    %68 = vmatprep.subr.mxu0 0.0
    %69 = vmatpush1.msra.mxu0 1.0
    %70 = vmatprep.subr.mxu0 0.0
    %71 = vmatpush1.msra.mxu0 1.0
    %72 = vmatprep.subr.mxu0 0.0
    %73 = vmatpush1.msra.mxu0 1.0
    %74 = vmatprep.subr.mxu0 0.0
    %75 = vmatpush1.msra.mxu0 1.0
    %76 = vmatprep.subr.mxu0 0.0
    %77 = vmatpush1.msra.mxu0 0.0
    %78 = vmatprep.subr.mxu0 0.0
    %79 = vmatpush1.msra.mxu0 0.0
    %80 = vmatprep.subr.mxu0 0.0
    %81 = vmatpush1.msra.mxu0 0.0
    %82 = vmatprep.subr.mxu0 0.0
    %83 = vmatpush1.msra.mxu0 0.0
    %84 = vmatprep.subr.mxu0 0.0
    %85 = vmatpush1.msra.mxu0 0.0
    %86 = vmatprep.subr.mxu0 0.0
    %87 = vmatpush1.msra.mxu0 0.0
    %88 = vmatprep.subr.mxu0 0.0
    %89 = vmatpush1.msra.mxu0 0.0
    %90 = vmatprep.subr.mxu0 0.0
    %91 = vmatpush1.msra.mxu0 0.0
    %92 = vmatprep.subr.mxu0 0.0
    %93 = vmatpush1.msra.mxu0 0.0
    %94 = vmatprep.subr.mxu0 0.0
    %95 = vmatpush1.msra.mxu0 0.0
    %96 = vmatprep.subr.mxu0 0.0
    %97 = vmatpush1.msra.mxu0 0.0
    %98 = vmatprep.subr.mxu0 0.0
    %99 = vmatpush1.msra.mxu0 0.0
    %100 = vmatprep.subr.mxu0 0.0
    %101 = vmatpush1.msra.mxu0 0.0
    %102 = vmatprep.subr.mxu0 0.0
    %103 = vmatpush1.msra.mxu0 0.0
    %104 = vmatprep.subr.mxu0 0.0
    %105 = vmatpush1.msra.mxu0 0.0
    %106 = vmatprep.subr.mxu0 0.0
    %107 = vmatpush1.msra.mxu0 0.0
    %108 = vmatprep.subr.mxu0 0.0
    %109 = vmatpush1.msra.mxu0 0.0
    %110 = vmatprep.subr.mxu0 0.0
    %111 = vmatpush1.msra.mxu0 0.0
    %112 = vmatprep.subr.mxu0 0.0
    %113 = vmatpush1.msra.mxu0 0.0
    %114 = vmatprep.subr.mxu0 0.0
    %115 = vmatpush1.msra.mxu0 0.0
    %116 = vmatprep.subr.mxu0 0.0
    %117 = vmatpush1.msra.mxu0 0.0
    %118 = vmatprep.subr.mxu0 0.0
    %119 = vmatpush1.msra.mxu0 0.0
    %120 = vmatprep.subr.mxu0 0.0
    %121 = vmatpush1.msra.mxu0 0.0
    %122 = vmatprep.subr.mxu0 0.0
    %123 = vmatpush1.msra.mxu0 0.0
    %124 = vmatprep.subr.mxu0 0.0
    %125 = vmatpush1.msra.mxu0 0.0
    %126 = vmatprep.subr.mxu0 0.0
    %127 = vmatpush1.msra.mxu0 0.0
    %128 = vmatprep.subr.mxu0 0.0
    %129 = vmatpush1.msra.mxu0 0.0
    %130 = vmatprep.subr.mxu0 0.0
    %131 = vmatpush1.msra.mxu0 0.0
    %132 = vmatprep.mubr.f32.mxu0 0.0
    %133 = vmatmul.mubr.f32.gmra.mrb[0].mxu0 %v57
    %v134 = vpop.f32.mrb[0].mxu0
    %v135 = vadd.f32 %v38, %v134
    %v136 = vpop.f32.mrb[0].mxu0
    %137 = vmatprep.mubr.f32.mxu0 0.0
    %138 = vmatmul.mubr.f32.gmra.mrb[0].mxu0 %v60
    %v139 = vpop.f32.mrb[0].mxu0
    %v140 = vadd.f32 %v43, %v139
    %v141 = vpop.f32.mrb[0].mxu0
    %142 = vmatprep.mubr.f32.mxu0 0.0
    %143 = vmatmul.mubr.f32.gmra.mrb[0].mxu0 %v63
    %v144 = vpop.f32.mrb[0].mxu0
    %v145 = vadd.f32 %v48, %v144
    %v146 = vpop.f32.mrb[0].mxu0
    %147 = vmatprep.mubr.f32.mxu0 0.0
    %148 = vmatmul.mubr.f32.gmra.mrb[0].mxu0 %v66
    %v149 = vpop.f32.mrb[0].mxu0
    %v150 = vadd.f32 %v53, %v149
    %v151 = vpop.f32.mrb[0].mxu0
    %152 = vdwg.mxu0
    %v153 = vld [vmem:[%s3] sm:$0x7]
    %v154 = vld [vmem:[%s4] sm:$0x7]
    %156 = vset.pattern.permute.xlu0 0
    %157 = vperm.xlu0 %156, %v154
    %v158 = vpop.permute.xlu0 %157
    %v161 = vsel %vm55, %v153, 0
    %163 = vmatprep.subr.mxu0 0.0
    %164 = vmatpush1.msra.mxu0 %v135
    %165 = vmatprep.subr.mxu0 0.0
    %166 = vmatpush1.msra.mxu0 %v140
    %167 = vmatprep.subr.mxu0 0.0
    %168 = vmatpush1.msra.mxu0 %v145
    %169 = vmatprep.subr.mxu0 0.0
    %170 = vmatpush1.msra.mxu0 %v150
    %171 = vmatprep.subr.mxu0 0.0
    %172 = vmatpush1.msra.mxu0 0.0
    %173 = vmatprep.subr.mxu0 0.0
    %174 = vmatpush1.msra.mxu0 0.0
    %175 = vmatprep.subr.mxu0 0.0
    %176 = vmatpush1.msra.mxu0 0.0
    %177 = vmatprep.subr.mxu0 0.0
    %178 = vmatpush1.msra.mxu0 0.0
    %179 = vmatprep.subr.mxu0 0.0
    %180 = vmatpush1.msra.mxu0 0.0
    %181 = vmatprep.subr.mxu0 0.0
    %182 = vmatpush1.msra.mxu0 0.0
    %183 = vmatprep.subr.mxu0 0.0
    %184 = vmatpush1.msra.mxu0 0.0
    %185 = vmatprep.subr.mxu0 0.0
    %186 = vmatpush1.msra.mxu0 0.0
    %187 = vmatprep.subr.mxu0 0.0
    %188 = vmatpush1.msra.mxu0 0.0
    %189 = vmatprep.subr.mxu0 0.0
    %190 = vmatpush1.msra.mxu0 0.0
    %191 = vmatprep.subr.mxu0 0.0
    %192 = vmatpush1.msra.mxu0 0.0
    %193 = vmatprep.subr.mxu0 0.0
    %194 = vmatpush1.msra.mxu0 0.0
    %195 = vmatprep.subr.mxu0 0.0
    %196 = vmatpush1.msra.mxu0 0.0
    %197 = vmatprep.subr.mxu0 0.0
    %198 = vmatpush1.msra.mxu0 0.0
    %199 = vmatprep.subr.mxu0 0.0
    %200 = vmatpush1.msra.mxu0 0.0
    %201 = vmatprep.subr.mxu0 0.0
    %202 = vmatpush1.msra.mxu0 0.0
    %203 = vmatprep.subr.mxu0 0.0
    %204 = vmatpush1.msra.mxu0 0.0
    %205 = vmatprep.subr.mxu0 0.0
    %206 = vmatpush1.msra.mxu0 0.0
    %207 = vmatprep.subr.mxu0 0.0
    %208 = vmatpush1.msra.mxu0 0.0
    %209 = vmatprep.subr.mxu0 0.0
    %210 = vmatpush1.msra.mxu0 0.0
    %211 = vmatprep.subr.mxu0 0.0
    %212 = vmatpush1.msra.mxu0 0.0
    %213 = vmatprep.subr.mxu0 0.0
    %214 = vmatpush1.msra.mxu0 0.0
    %215 = vmatprep.subr.mxu0 0.0
    %216 = vmatpush1.msra.mxu0 0.0
    %217 = vmatprep.subr.mxu0 0.0
    %218 = vmatpush1.msra.mxu0 0.0
    %219 = vmatprep.subr.mxu0 0.0
    %220 = vmatpush1.msra.mxu0 0.0
    %221 = vmatprep.subr.mxu0 0.0
    %222 = vmatpush1.msra.mxu0 0.0
    %223 = vmatprep.subr.mxu0 0.0
    %224 = vmatpush1.msra.mxu0 0.0
    %225 = vmatprep.subr.mxu0 0.0
    %226 = vmatpush1.msra.mxu0 0.0
    %227 = vmatprep.mubr.f32.mxu0 0.0
    %228 = vmatmul.mubr.f32.gmra.mrb[0].mxu0 %v161
    %v229 = vpop.f32.mrb[0].mxu0
    %v230 = vadd.f32 %v158, %v229
    %v231 = vpop.f32.mrb[0].mxu0
    %232 = vdwg.mxu0
    %v233 = vld [vmem:[%s0] sm:$0x7]
    %v234 = vadd.f32 %v230, %v233
    %v235 = vld [vmem:[%s5] sm:$0x7]
    %v236 = vld [vmem:[%s6] sm:$0x7]
    %238 = vset.pattern.permute.xlu0 0
    %239 = vperm.xlu0 %238, %v236
    %v240 = vpop.permute.xlu0 %239
    %vm242 = vcmask 23552
    %v244 = vsel %vm242, %v235, 0
    %vm246 = vcmask 1042432
    %v248 = vsel %vm246, %v234, 0
    %250 = vmatprep.subr.mxu0 0.0
    %251 = vmatpush1.msra.mxu0 %v248
    %252 = vmatprep.subr.mxu0 0.0
    %253 = vmatpush1.msra.mxu0 0.0
    %254 = vmatprep.subr.mxu0 0.0
    %255 = vmatpush1.msra.mxu0 0.0
    %256 = vmatprep.subr.mxu0 0.0
    %257 = vmatpush1.msra.mxu0 0.0
    %258 = vmatprep.subr.mxu0 0.0
    %259 = vmatpush1.msra.mxu0 0.0
    %260 = vmatprep.subr.mxu0 0.0
    %261 = vmatpush1.msra.mxu0 0.0
    %262 = vmatprep.subr.mxu0 0.0
    %263 = vmatpush1.msra.mxu0 0.0
    %264 = vmatprep.subr.mxu0 0.0
    %265 = vmatpush1.msra.mxu0 0.0
    %266 = vmatprep.subr.mxu0 0.0
    %267 = vmatpush1.msra.mxu0 0.0
    %268 = vmatprep.subr.mxu0 0.0
    %269 = vmatpush1.msra.mxu0 0.0
    %270 = vmatprep.subr.mxu0 0.0
    %271 = vmatpush1.msra.mxu0 0.0
    %272 = vmatprep.subr.mxu0 0.0
    %273 = vmatpush1.msra.mxu0 0.0
    %274 = vmatprep.subr.mxu0 0.0
    %275 = vmatpush1.msra.mxu0 0.0
    %276 = vmatprep.subr.mxu0 0.0
    %277 = vmatpush1.msra.mxu0 0.0
    %278 = vmatprep.subr.mxu0 0.0
    %279 = vmatpush1.msra.mxu0 0.0
    %280 = vmatprep.subr.mxu0 0.0
    %281 = vmatpush1.msra.mxu0 0.0
    %282 = vmatprep.subr.mxu0 0.0
    %283 = vmatpush1.msra.mxu0 0.0
    %284 = vmatprep.subr.mxu0 0.0
    %285 = vmatpush1.msra.mxu0 0.0
    %286 = vmatprep.subr.mxu0 0.0
    %287 = vmatpush1.msra.mxu0 0.0
    %288 = vmatprep.subr.mxu0 0.0
    %289 = vmatpush1.msra.mxu0 0.0
    %290 = vmatprep.subr.mxu0 0.0
    %291 = vmatpush1.msra.mxu0 0.0
    %292 = vmatprep.subr.mxu0 0.0
    %293 = vmatpush1.msra.mxu0 0.0
    %294 = vmatprep.subr.mxu0 0.0
    %295 = vmatpush1.msra.mxu0 0.0
    %296 = vmatprep.subr.mxu0 0.0
    %297 = vmatpush1.msra.mxu0 0.0
    %298 = vmatprep.subr.mxu0 0.0
    %299 = vmatpush1.msra.mxu0 0.0
    %300 = vmatprep.subr.mxu0 0.0
    %301 = vmatpush1.msra.mxu0 0.0
    %302 = vmatprep.subr.mxu0 0.0
    %303 = vmatpush1.msra.mxu0 0.0
    %304 = vmatprep.subr.mxu0 0.0
    %305 = vmatpush1.msra.mxu0 0.0
    %306 = vmatprep.subr.mxu0 0.0
    %307 = vmatpush1.msra.mxu0 0.0
    %308 = vmatprep.subr.mxu0 0.0
    %309 = vmatpush1.msra.mxu0 0.0
    %310 = vmatprep.subr.mxu0 0.0
    %311 = vmatpush1.msra.mxu0 0.0
    %312 = vmatprep.subr.mxu0 0.0
    %313 = vmatpush1.msra.mxu0 0.0
    %314 = vmatprep.mubr.f32.mxu0 0.0
    %315 = vmatmul.mubr.f32.gmra.mrb[0].mxu0 %v244
    %v316 = vpop.f32.mrb[0].mxu0
    %v317 = vadd.f32 %v240, %v316
    %v318 = vpop.f32.mrb[0].mxu0
    %319 = vdwg.mxu0
    %320 = vst [vmem:[#allocation2] sm:$0x7] %v317
    // Predicated region
    $region30: #{tpu_custom_call.1} parent=1 // pred_check
      _
    $region31: #{tpu_custom_call.1} parent=1 // pred_check_branch
      %322 = sbr.rel (0) target = $region33
    $region32: #{tpu_custom_call.1} parent=1 // pred_region
      %s324 = ssub.s32 64, 64
      %325 = vsyncadd [#allocation3], %s324
      %s327 = sshll.u32 [#allocation2], 4
      %s328 = int_to_ptr.vmem [resolvable:$true] %s327
      %330 = dma.vmem_to_hbm [thread:$0]  %s328, 64, %s7, [#allocation3]
    $region33: #{tpu_custom_call.1} parent=1 // pred_fallthru
      _
    // Predicated region
    $region34: #{tpu_custom_call.1} parent=1 // pred_check
      _
    $region35: #{tpu_custom_call.1} parent=1 // pred_check_branch
      %332 = sbr.rel (0) target = $region37
    $region36: #{tpu_custom_call.1} parent=1 // pred_region
      %333 = dma.done [#allocation3], 64
    $region37: #{tpu_custom_call.1} parent=1 // pred_fallthru
      _
    %334 = vsyncpa [#allocation3], 1

</llo_original>
